<compile_context>
chip_gen: v5e
topology: v5e:2x2
jax: 0.10.0
libtpu: 0.0.40
codegen_flags: <defaults>
</compile_context>

<pallas_src>
import jax
import jax.numpy as jnp
from jax.experimental import pallas as pl
from jax.experimental.pallas import tpu as pltpu


def _round_up(x, m):
    return ((x + m - 1) // m) * m


def _cdiv(a, b):
    return (a + b - 1) // b


# ----------------------------------------------------------------------------
# Kernel
# ----------------------------------------------------------------------------

def _twinq_kernel(state_ref, action_ref, w1s_ref, w1a_ref, b1_ref,
                  w2_ref, b2_ref, w3_ref, b3_ref, out_ref):
    """Twin-Q MLP for one batch tile.  Batch maps to the LANE axis.

    state_ref : (Ds, TB) bf16     action_ref : (Da, TB) bf16
    w1s_ref   : (2H, Ds) bf16     w1a_ref    : (2H, Da) bf16
    b1_ref    : (2H, 1)  f32
    w2_ref    : (2H, H)  bf16   rows [:H] = net1 W2^T, rows [H:] = net2 W2^T
    b2_ref    : (2H, 1)  f32
    w3_ref    : (2, H)   bf16   row 0 = net1 W3^T, row 1 = net2 W3^T
    b3_ref    : (2, 1)   f32
    out_ref   : (1, TB)  f32    min(q1, q2) per batch column
    """
    h2 = w2_ref.shape[0]
    h = h2 // 2

    # Layer 1: split-input matmul == concat([state, action], 1) @ W1, both nets
    # packed on the output (sublane) axis.
    a1 = jnp.dot(w1s_ref[...], state_ref[...], preferred_element_type=jnp.float32)
    a1 = a1 + jnp.dot(w1a_ref[...], action_ref[...],
                      preferred_element_type=jnp.float32)
    a1 = jnp.maximum(a1 + b1_ref[...], 0.0)                      # (2H, TB) f32
    a1 = a1.astype(jnp.bfloat16)

    # Layer 2: each network's (H, H) weight separately (no block-diag padding).
    g1 = jnp.dot(w2_ref[:h, :], a1[:h, :], preferred_element_type=jnp.float32)
    g1 = jnp.maximum(g1 + b2_ref[:h, :], 0.0).astype(jnp.bfloat16)
    g2 = jnp.dot(w2_ref[h:, :], a1[h:, :], preferred_element_type=jnp.float32)
    g2 = jnp.maximum(g2 + b2_ref[h:, :], 0.0).astype(jnp.bfloat16)

    # Layer 3 scalar heads + fused twin-min -> lane-dense (1, TB) store.
    q1 = jnp.dot(w3_ref[0:1, :], g1, preferred_element_type=jnp.float32) + b3_ref[0:1, :]
    q2 = jnp.dot(w3_ref[1:2, :], g2, preferred_element_type=jnp.float32) + b3_ref[1:2, :]
    out_ref[...] = jnp.minimum(q1, q2)


# ----------------------------------------------------------------------------
# Parameter packing (done once, outside the hot path)
# ----------------------------------------------------------------------------

def pack_twinq_params(params, state_dim, compute_dtype=jnp.bfloat16):
    """Pack per-network torch-style params into the transposed kernel layout."""
    p1, p2 = params["q1"], params["q2"]

    # Layer 1: stack both nets on the output axis, transpose -> (2H, D),
    # split the input axis into state / action columns.
    w1_t = jnp.concatenate([p1["w1"].T, p2["w1"].T], axis=0)                    # (2H, D)
    w1s_t = w1_t[:, :state_dim].astype(compute_dtype)                           # (2H, Ds)
    w1a_t = w1_t[:, state_dim:].astype(compute_dtype)                           # (2H, Da)
    b1 = jnp.concatenate([p1["b1"], p2["b1"]], axis=1).T.astype(jnp.float32)    # (2H, 1)

    # Layer 2: per-network transposed weights stacked on sublanes -> (2H, H).
    w2_t = jnp.concatenate([p1["w2"].T, p2["w2"].T], axis=0).astype(compute_dtype)
    b2 = jnp.concatenate([p1["b2"], p2["b2"]], axis=1).T.astype(jnp.float32)    # (2H, 1)

    # Layer 3: one row per network.
    w3_t = jnp.concatenate([p1["w3"].T, p2["w3"].T], axis=0).astype(compute_dtype)  # (2, H)
    b3 = jnp.concatenate([p1["b3"], p2["b3"]], axis=1).T.astype(jnp.float32)        # (2, 1)

    return {"w1s_t": w1s_t, "w1a_t": w1a_t, "b1": b1,
            "w2_t": w2_t, "b2": b2, "w3_t": w3_t, "b3": b3}


# ----------------------------------------------------------------------------
# Forward wrapper
# ----------------------------------------------------------------------------

def _pick_batch_tile(B, H2):
    """Lane-axis batch tile: big enough to amortize grid-step overhead, small
    enough that in-kernel activations (~6 live (2H, tb) f32 slabs) fit the
    default scoped VMEM on v5e/v6e/v7x, and >= 2 grid steps when possible so
    v7x megacore actually shards the batch."""
    budget_bytes = 8 * 1024 * 1024
    cap = budget_bytes // (6 * H2 * 4)
    cap = max(128, min(8192, (cap // 128) * 128))
    n_steps = max(2, _cdiv(B, cap))
    tb = min(cap, _round_up(_cdiv(B, n_steps), 128))
    return tb


def twinq_forward(state, action, packed):
    """forward(state, action) = min(q1, q2); returns shape (batch,) float32."""
    B, Ds = state.shape
    Da = action.shape[1]
    H2 = packed["w2_t"].shape[0]                 # 2 * hidden_dim
    compute_dtype = packed["w2_t"].dtype

    # Batch -> lane axis: transpose + bf16 cast once in the wrapper, then pad
    # the lane axis to a whole number of tiles (dead columns sliced off below).
    state_t = state.astype(compute_dtype).T      # (Ds, B)
    action_t = action.astype(compute_dtype).T    # (Da, B)

    tb = _pick_batch_tile(B, H2)
    Bp = _round_up(B, tb)
    if Bp != B:
        pad = Bp - B
        state_t = jnp.pad(state_t, ((0, 0), (0, pad)))
        action_t = jnp.pad(action_t, ((0, 0), (0, pad)))

    grid = (Bp // tb,)
    batch_map = lambda i: (0, i)
    const_map = lambda i: (0, 0)                 # weights resident across grid

    q_min = pl.pallas_call(
        _twinq_kernel,
        out_shape=jax.ShapeDtypeStruct((1, Bp), jnp.float32),
        grid=grid,
        in_specs=[
            pl.BlockSpec((Ds, tb), batch_map),        # state^T tile
            pl.BlockSpec((Da, tb), batch_map),        # action^T tile
            pl.BlockSpec((H2, Ds), const_map),        # W1^T (state cols)
            pl.BlockSpec((H2, Da), const_map),        # W1^T (action cols)
            pl.BlockSpec((H2, 1), const_map),         # b1
            pl.BlockSpec((H2, H2 // 2), const_map),   # W2^T (both nets stacked)
            pl.BlockSpec((H2, 1), const_map),         # b2
            pl.BlockSpec((2, H2 // 2), const_map),    # W3^T
            pl.BlockSpec((2, 1), const_map),          # b3
        ],
        out_specs=pl.BlockSpec((1, tb), batch_map),
        compiler_params=pltpu.CompilerParams(
            dimension_semantics=("parallel",)),
    )(state_t, action_t,
      packed["w1s_t"], packed["w1a_t"], packed["b1"],
      packed["w2_t"], packed["b2"], packed["w3_t"], packed["b3"])

    return q_min[0, :B]


# ----------------------------------------------------------------------------
# Parameter construction + references (for correctness checking)
# ----------------------------------------------------------------------------

def _linear_init(key, fan_in, fan_out):
    """Deterministic init mimicking torch.nn.Linear (uniform +/- 1/sqrt(fan_in))."""
    kw, kb = jax.random.split(key)
    bound = 1.0 / jnp.sqrt(jnp.float32(fan_in))
    w = jax.random.uniform(kw, (fan_in, fan_out), jnp.float32, -bound, bound)
    b = jax.random.uniform(kb, (1, fan_out), jnp.float32, -bound, bound)
    return w, b


def make_twinq_params(key, state_dim, action_dim, hidden_dim=32, n_hidden=2):
    assert n_hidden == 2, "kernel is written for the module default n_hidden=2"
    in_dim = state_dim + action_dim
    keys = jax.random.split(key, 6)
    w1a, b1a = _linear_init(keys[0], in_dim, hidden_dim)
    w2a, b2a = _linear_init(keys[1], hidden_dim, hidden_dim)
    w3a, b3a = _linear_init(keys[2], hidden_dim, 1)
    w1b, b1b = _linear_init(keys[3], in_dim, hidden_dim)
    w2b, b2b = _linear_init(keys[4], hidden_dim, hidden_dim)
    w3b, b3b = _linear_init(keys[5], hidden_dim, 1)
    return {
        "q1": {"w1": w1a, "b1": b1a, "w2": w2a, "b2": b2a, "w3": w3a, "b3": b3a},
        "q2": {"w1": w1b, "b1": b1b, "w2": w2b, "b2": b2b, "w3": w3b, "b3": b3b},
    }


def twinq_reference_f32(state, action, params):
    """Pure-f32 reference == the torch module's math."""
    sa = jnp.concatenate([state, action], axis=1).astype(jnp.float32)

    def mlp(p):
        h = jnp.maximum(sa @ p["w1"] + p["b1"], 0.0)
        h = jnp.maximum(h @ p["w2"] + p["b2"], 0.0)
        return (h @ p["w3"] + p["b3"])[:, 0]

    return jnp.minimum(mlp(params["q1"]), mlp(params["q2"]))


def twinq_reference_bf16(state, action, params):
    """Reference that mimics the kernel's bf16 streaming / f32 accumulation."""
    cast = lambda x: x.astype(jnp.bfloat16)
    sa = jnp.concatenate([state, action], axis=1)

    def mlp(p):
        h = jnp.dot(cast(sa), cast(p["w1"]), preferred_element_type=jnp.float32)
        h = jnp.maximum(h + p["b1"], 0.0)
        h = jnp.dot(cast(h), cast(p["w2"]), preferred_element_type=jnp.float32)
        h = jnp.maximum(h + p["b2"], 0.0)
        return (jnp.dot(cast(h), cast(p["w3"]),
                        preferred_element_type=jnp.float32) + p["b3"])[:, 0]

    return jnp.minimum(mlp(params["q1"]), mlp(params["q2"]))


if __name__ == "__main__":
    key = jax.random.PRNGKey(0)
    k_state, k_action, k_params = jax.random.split(key, 3)

    batch = 8
    state_dim = 8
    action_dim = 4
    hidden_dim = 32

    state = jax.random.normal(k_state, (batch, state_dim), jnp.float32)
    action = jax.random.normal(k_action, (batch, action_dim), jnp.float32)
    params = make_twinq_params(k_params, state_dim, action_dim, hidden_dim)
    packed = pack_twinq_params(params, state_dim)

    q_min = twinq_forward(state, action, packed)
    q_min = jax.block_until_ready(q_min)
    assert q_min.shape == (batch,)

    # Bit-faithful check against a reference that applies the same bf16
    # streaming, and a coarser check against the exact f32 module semantics.
    q_ref_bf16 = twinq_reference_bf16(state, action, params)
    q_ref_f32 = twinq_reference_f32(state, action, params)
    assert jnp.allclose(q_min, q_ref_bf16, atol=5e-3, rtol=5e-3), (q_min, q_ref_bf16)
    assert jnp.allclose(q_min, q_ref_f32, atol=5e-2, rtol=5e-2), (q_min, q_ref_f32)

    print("KERNEL_OK")
</pallas_src>

<mosaic_0001>
module attributes {stable_mosaic.version = 11 : i64} {
  func.func @_twinq_kernel(%arg0: i32, %arg1: memref<8x128xbf16, #tpu.memory_space<vmem>>, %arg2: memref<4x128xbf16, #tpu.memory_space<vmem>>, %arg3: memref<64x8xbf16, #tpu.memory_space<vmem>>, %arg4: memref<64x4xbf16, #tpu.memory_space<vmem>>, %arg5: memref<64x1xf32, #tpu.memory_space<vmem>>, %arg6: memref<64x32xbf16, #tpu.memory_space<vmem>>, %arg7: memref<64x1xf32, #tpu.memory_space<vmem>>, %arg8: memref<2x32xbf16, #tpu.memory_space<vmem>>, %arg9: memref<2x1xf32, #tpu.memory_space<vmem>>, %arg10: memref<1x128xf32, #tpu.memory_space<vmem>>) attributes {dimension_semantics = [#tpu.dimension_semantics<parallel>], iteration_bounds = array<i64: 1>, scalar_prefetch = 0 : i64, scratch_operands = 0 : i64, tpu.core_type = #tpu.core_type<tc>, window_params = [{transform_indices = @transform_0, window_bounds = array<i64: 8, 128>}, {transform_indices = @transform_1, window_bounds = array<i64: 4, 128>}, {pipeline_mode = #tpu.pipeline_mode<synchronous>, transform_indices = @transform_2, window_bounds = array<i64: 64, 8>}, {pipeline_mode = #tpu.pipeline_mode<synchronous>, transform_indices = @transform_3, window_bounds = array<i64: 64, 4>}, {pipeline_mode = #tpu.pipeline_mode<synchronous>, transform_indices = @transform_4, window_bounds = array<i64: 64, 1>}, {pipeline_mode = #tpu.pipeline_mode<synchronous>, transform_indices = @transform_5, window_bounds = array<i64: 64, 32>}, {pipeline_mode = #tpu.pipeline_mode<synchronous>, transform_indices = @transform_6, window_bounds = array<i64: 64, 1>}, {pipeline_mode = #tpu.pipeline_mode<synchronous>, transform_indices = @transform_7, window_bounds = array<i64: 2, 32>}, {pipeline_mode = #tpu.pipeline_mode<synchronous>, transform_indices = @transform_8, window_bounds = array<i64: 2, 1>}, {transform_indices = @transform_9, window_bounds = array<i64: 1, 128>}]} {
    %c0 = arith.constant 0 : index
    %c0_0 = arith.constant 0 : index
    %0 = vector.load %arg3[%c0, %c0_0] : memref<64x8xbf16, #tpu.memory_space<vmem>>, vector<64x8xbf16>
    %c0_1 = arith.constant 0 : index
    %c0_2 = arith.constant 0 : index
    %1 = vector.load %arg1[%c0_1, %c0_2] : memref<8x128xbf16, #tpu.memory_space<vmem>>, vector<8x128xbf16>
    %cst = arith.constant dense<0.000000e+00> : vector<64x128xf32>
    %2 = tpu.matmul %0, %1, %cst {dimension_numbers = #tpu.dot_dimension_numbers<[1], [0], [0], [1], [0, 0, 1, 1], [], []>} : vector<64x8xbf16>, vector<8x128xbf16>, vector<64x128xf32> -> vector<64x128xf32>
    %c0_3 = arith.constant 0 : index
    %c0_4 = arith.constant 0 : index
    %3 = vector.load %arg4[%c0_3, %c0_4] : memref<64x4xbf16, #tpu.memory_space<vmem>>, vector<64x4xbf16>
    %c0_5 = arith.constant 0 : index
    %c0_6 = arith.constant 0 : index
    %4 = vector.load %arg2[%c0_5, %c0_6] : memref<4x128xbf16, #tpu.memory_space<vmem>>, vector<4x128xbf16>
    %cst_7 = arith.constant dense<0.000000e+00> : vector<64x128xf32>
    %5 = tpu.matmul %3, %4, %cst_7 {dimension_numbers = #tpu.dot_dimension_numbers<[1], [0], [0], [1], [0, 0, 1, 1], [], []>} : vector<64x4xbf16>, vector<4x128xbf16>, vector<64x128xf32> -> vector<64x128xf32>
    %6 = arith.addf %2, %5 : vector<64x128xf32>
    %c0_8 = arith.constant 0 : index
    %c0_9 = arith.constant 0 : index
    %7 = vector.load %arg5[%c0_8, %c0_9] : memref<64x1xf32, #tpu.memory_space<vmem>>, vector<64x1xf32>
    %8 = vector.broadcast %7 : vector<64x1xf32> to vector<64x128xf32>
    %9 = arith.addf %6, %8 : vector<64x128xf32>
    %cst_10 = arith.constant 0.000000e+00 : f32
    %10 = vector.broadcast %cst_10 : f32 to vector<64x128xf32>
    %11 = arith.maximumf %9, %10 : vector<64x128xf32>
    %12 = arith.truncf %11 : vector<64x128xf32> to vector<64x128xbf16>
    %c0_11 = arith.constant 0 : index
    %c0_12 = arith.constant 0 : index
    %13 = vector.load %arg6[%c0_11, %c0_12] : memref<64x32xbf16, #tpu.memory_space<vmem>>, vector<32x32xbf16>
    %14 = vector.extract_strided_slice %12 {offsets = [0, 0], sizes = [32, 128], strides = [1, 1]} : vector<64x128xbf16> to vector<32x128xbf16>
    %cst_13 = arith.constant dense<0.000000e+00> : vector<32x128xf32>
    %15 = tpu.matmul %13, %14, %cst_13 {dimension_numbers = #tpu.dot_dimension_numbers<[1], [0], [0], [1], [0, 0, 1, 1], [], []>} : vector<32x32xbf16>, vector<32x128xbf16>, vector<32x128xf32> -> vector<32x128xf32>
    %c0_14 = arith.constant 0 : index
    %c0_15 = arith.constant 0 : index
    %16 = vector.load %arg7[%c0_14, %c0_15] : memref<64x1xf32, #tpu.memory_space<vmem>>, vector<32x1xf32>
    %17 = vector.broadcast %16 : vector<32x1xf32> to vector<32x128xf32>
    %18 = arith.addf %15, %17 : vector<32x128xf32>
    %cst_16 = arith.constant 0.000000e+00 : f32
    %19 = vector.broadcast %cst_16 : f32 to vector<32x128xf32>
    %20 = arith.maximumf %18, %19 : vector<32x128xf32>
    %21 = arith.truncf %20 : vector<32x128xf32> to vector<32x128xbf16>
    %c32 = arith.constant 32 : index
    %c0_17 = arith.constant 0 : index
    %22 = vector.load %arg6[%c32, %c0_17] : memref<64x32xbf16, #tpu.memory_space<vmem>>, vector<32x32xbf16>
    %23 = vector.extract_strided_slice %12 {offsets = [32, 0], sizes = [32, 128], strides = [1, 1]} : vector<64x128xbf16> to vector<32x128xbf16>
    %cst_18 = arith.constant dense<0.000000e+00> : vector<32x128xf32>
    %24 = tpu.matmul %22, %23, %cst_18 {dimension_numbers = #tpu.dot_dimension_numbers<[1], [0], [0], [1], [0, 0, 1, 1], [], []>} : vector<32x32xbf16>, vector<32x128xbf16>, vector<32x128xf32> -> vector<32x128xf32>
    %c32_19 = arith.constant 32 : index
    %c0_20 = arith.constant 0 : index
    %25 = vector.load %arg7[%c32_19, %c0_20] : memref<64x1xf32, #tpu.memory_space<vmem>>, vector<32x1xf32>
    %26 = vector.broadcast %25 : vector<32x1xf32> to vector<32x128xf32>
    %27 = arith.addf %24, %26 : vector<32x128xf32>
    %cst_21 = arith.constant 0.000000e+00 : f32
    %28 = vector.broadcast %cst_21 : f32 to vector<32x128xf32>
    %29 = arith.maximumf %27, %28 : vector<32x128xf32>
    %30 = arith.truncf %29 : vector<32x128xf32> to vector<32x128xbf16>
    %c0_22 = arith.constant 0 : index
    %c0_23 = arith.constant 0 : index
    %31 = vector.load %arg8[%c0_22, %c0_23] : memref<2x32xbf16, #tpu.memory_space<vmem>>, vector<1x32xbf16>
    %cst_24 = arith.constant dense<0.000000e+00> : vector<1x128xf32>
    %32 = tpu.matmul %31, %21, %cst_24 {dimension_numbers = #tpu.dot_dimension_numbers<[1], [0], [0], [1], [0, 0, 1, 1], [], []>} : vector<1x32xbf16>, vector<32x128xbf16>, vector<1x128xf32> -> vector<1x128xf32>
    %c0_25 = arith.constant 0 : index
    %c0_26 = arith.constant 0 : index
    %33 = vector.load %arg9[%c0_25, %c0_26] : memref<2x1xf32, #tpu.memory_space<vmem>>, vector<1x1xf32>
    %34 = vector.broadcast %33 : vector<1x1xf32> to vector<1x128xf32>
    %35 = arith.addf %32, %34 : vector<1x128xf32>
    %c1 = arith.constant 1 : index
    %c0_27 = arith.constant 0 : index
    %36 = vector.load %arg8[%c1, %c0_27] : memref<2x32xbf16, #tpu.memory_space<vmem>>, vector<1x32xbf16>
    %cst_28 = arith.constant dense<0.000000e+00> : vector<1x128xf32>
    %37 = tpu.matmul %36, %30, %cst_28 {dimension_numbers = #tpu.dot_dimension_numbers<[1], [0], [0], [1], [0, 0, 1, 1], [], []>} : vector<1x32xbf16>, vector<32x128xbf16>, vector<1x128xf32> -> vector<1x128xf32>
    %c1_29 = arith.constant 1 : index
    %c0_30 = arith.constant 0 : index
    %38 = vector.load %arg9[%c1_29, %c0_30] : memref<2x1xf32, #tpu.memory_space<vmem>>, vector<1x1xf32>
    %39 = vector.broadcast %38 : vector<1x1xf32> to vector<1x128xf32>
    %40 = arith.addf %37, %39 : vector<1x128xf32>
    %41 = arith.minimumf %35, %40 : vector<1x128xf32>
    %c0_31 = arith.constant 0 : index
    %c0_32 = arith.constant 0 : index
    %42 = vector.load %arg10[%c0_31, %c0_32] : memref<1x128xf32, #tpu.memory_space<vmem>>, vector<1x128xf32>
    tpu.vector_store %arg10[%c0_31, %c0_32], %41 {strides = array<i32>} : memref<1x128xf32, #tpu.memory_space<vmem>>, vector<1x128xf32>,
    return
  }
  func.func @transform_0(%arg0: i32) -> (i32, i32) {
    %c0_i32 = arith.constant 0 : i32
    %c0_i32_0 = arith.constant 0 : i32
    return %c0_i32, %arg0 : i32, i32
  }
  func.func @transform_1(%arg0: i32) -> (i32, i32) {
    %c0_i32 = arith.constant 0 : i32
    %c0_i32_0 = arith.constant 0 : i32
    return %c0_i32, %arg0 : i32, i32
  }
  func.func @transform_2(%arg0: i32) -> (i32, i32) {
    %c0_i32 = arith.constant 0 : i32
    %c0_i32_0 = arith.constant 0 : i32
    %c0_i32_1 = arith.constant 0 : i32
    return %c0_i32, %c0_i32_0 : i32, i32
  }
  func.func @transform_3(%arg0: i32) -> (i32, i32) {
    %c0_i32 = arith.constant 0 : i32
    %c0_i32_0 = arith.constant 0 : i32
    %c0_i32_1 = arith.constant 0 : i32
    return %c0_i32, %c0_i32_0 : i32, i32
  }
  func.func @transform_4(%arg0: i32) -> (i32, i32) {
    %c0_i32 = arith.constant 0 : i32
    %c0_i32_0 = arith.constant 0 : i32
    %c0_i32_1 = arith.constant 0 : i32
    return %c0_i32, %c0_i32_0 : i32, i32
  }
  func.func @transform_5(%arg0: i32) -> (i32, i32) {
    %c0_i32 = arith.constant 0 : i32
    %c0_i32_0 = arith.constant 0 : i32
    %c0_i32_1 = arith.constant 0 : i32
    return %c0_i32, %c0_i32_0 : i32, i32
  }
  func.func @transform_6(%arg0: i32) -> (i32, i32) {
    %c0_i32 = arith.constant 0 : i32
    %c0_i32_0 = arith.constant 0 : i32
    %c0_i32_1 = arith.constant 0 : i32
    return %c0_i32, %c0_i32_0 : i32, i32
  }
  func.func @transform_7(%arg0: i32) -> (i32, i32) {
    %c0_i32 = arith.constant 0 : i32
    %c0_i32_0 = arith.constant 0 : i32
    %c0_i32_1 = arith.constant 0 : i32
    return %c0_i32, %c0_i32_0 : i32, i32
  }
  func.func @transform_8(%arg0: i32) -> (i32, i32) {
    %c0_i32 = arith.constant 0 : i32
    %c0_i32_0 = arith.constant 0 : i32
    %c0_i32_1 = arith.constant 0 : i32
    return %c0_i32, %c0_i32_0 : i32, i32
  }
  func.func @transform_9(%arg0: i32) -> (i32, i32) {
    %c0_i32 = arith.constant 0 : i32
    %c0_i32_0 = arith.constant 0 : i32
    return %c0_i32, %arg0 : i32, i32
  }
}

</mosaic_0001>

<llo_original>
// kernel: tpu_custom_call.1
$region0: #{tpu_custom_call.1}
  #allocation0 [shape = 'u32[]', space=smem, size = 0x4, offset = 0x4, fixed_abs, tag = 'smem constant byte address 0x4 - core index']
  #allocation1 [shape = 'u32[72,128]{1,0:T(1,128)}', space=vmem, size = 0x9000, scoped, tag = 'internal scratch']
  %s0 = inlined_call_operand.vmem [shape: bf16[8,128], index: 0, kind: input, shape index: {}]
  %s1 = inlined_call_operand.vmem [shape: bf16[4,128], index: 1, kind: input, shape index: {}]
  %s2 = inlined_call_operand.vmem [shape: bf16[64,8], index: 2, kind: input, shape index: {}]
  %s3 = inlined_call_operand.vmem [shape: bf16[64,4], index: 3, kind: input, shape index: {}]
  %s4 = inlined_call_operand.vmem [shape: f32[64,1], index: 4, kind: input, shape index: {}]
  %s5 = inlined_call_operand.vmem [shape: bf16[64,32], index: 5, kind: input, shape index: {}]
  %s6 = inlined_call_operand.vmem [shape: f32[64,1], index: 6, kind: input, shape index: {}]
  %s7 = inlined_call_operand.vmem [shape: bf16[2,32], index: 7, kind: input, shape index: {}]
  %s8 = inlined_call_operand.vmem [shape: f32[2,1], index: 8, kind: input, shape index: {}]
  %s9 = inlined_call_operand.hbm [shape: f32[1,128], index: 9, kind: output, shape index: {}]
  %s10 = sld [smem:[#allocation0]]
  $region46: #{tpu_custom_call.1} parent=0
    _
  %s12 = ssub.s32 1, %s10
  %s13 = scalar_select 0, %s12, %s10
  $region1: #{tpu_custom_call.1} parent=0
    #allocation2 [shape = 'u8[512]{0}', space=vmem, size = 0x400, scoped, tag = 'output window, operand 0, single buffered']
    #allocation3 [shape = 's32[1]{0}', space=sflag, size = 0x4, scoped, tag = 'scoped memory for tpu_custom_call.1']
    %14 = vsyncpa [#allocation3], 0
    // Predicated region
    $region2: #{tpu_custom_call.1} parent=1 // pred_check
      _
    $region3: #{tpu_custom_call.1} parent=1 // pred_check_branch
      %16 = sbr.rel (0) target = $region5
    $region4: #{tpu_custom_call.1} parent=1 // pred_region
      _
    $region5: #{tpu_custom_call.1} parent=1 // pred_fallthru
      _
    // Predicated region
    $region6: #{tpu_custom_call.1} parent=1 // pred_check
      _
    $region7: #{tpu_custom_call.1} parent=1 // pred_check_branch
      %18 = sbr.rel (0) target = $region9
    $region8: #{tpu_custom_call.1} parent=1 // pred_region
      _
    $region9: #{tpu_custom_call.1} parent=1 // pred_fallthru
      _
    // Predicated region
    $region10: #{tpu_custom_call.1} parent=1 // pred_check
      _
    $region11: #{tpu_custom_call.1} parent=1 // pred_check_branch
      %20 = sbr.rel (0) target = $region13
    $region12: #{tpu_custom_call.1} parent=1 // pred_region
      _
    $region13: #{tpu_custom_call.1} parent=1 // pred_fallthru
      _
    // Predicated region
    $region14: #{tpu_custom_call.1} parent=1 // pred_check
      _
    $region15: #{tpu_custom_call.1} parent=1 // pred_check_branch
      %22 = sbr.rel (0) target = $region17
    $region16: #{tpu_custom_call.1} parent=1 // pred_region
      _
    $region17: #{tpu_custom_call.1} parent=1 // pred_fallthru
      _
    // Predicated region
    $region18: #{tpu_custom_call.1} parent=1 // pred_check
      _
    $region19: #{tpu_custom_call.1} parent=1 // pred_check_branch
      %24 = sbr.rel (0) target = $region21
    $region20: #{tpu_custom_call.1} parent=1 // pred_region
      _
    $region21: #{tpu_custom_call.1} parent=1 // pred_fallthru
      _
    // Predicated region
    $region22: #{tpu_custom_call.1} parent=1 // pred_check
      _
    $region23: #{tpu_custom_call.1} parent=1 // pred_check_branch
      %26 = sbr.rel (0) target = $region25
    $region24: #{tpu_custom_call.1} parent=1 // pred_region
      _
    $region25: #{tpu_custom_call.1} parent=1 // pred_fallthru
      _
    // Predicated region
    $region26: #{tpu_custom_call.1} parent=1 // pred_check
      _
    $region27: #{tpu_custom_call.1} parent=1 // pred_check_branch
      %28 = sbr.rel (0) target = $region29
    $region28: #{tpu_custom_call.1} parent=1 // pred_region
      _
    $region29: #{tpu_custom_call.1} parent=1 // pred_fallthru
      _
    // Predicated region
    $region30: #{tpu_custom_call.1} parent=1 // pred_check
      _
    $region31: #{tpu_custom_call.1} parent=1 // pred_check_branch
      %30 = sbr.rel (0) target = $region33
    $region32: #{tpu_custom_call.1} parent=1 // pred_region
      _
    $region33: #{tpu_custom_call.1} parent=1 // pred_fallthru
      _
    // Predicated region
    $region34: #{tpu_custom_call.1} parent=1 // pred_check
      _
    $region35: #{tpu_custom_call.1} parent=1 // pred_check_branch
      %32 = sbr.rel (0) target = $region37
    $region36: #{tpu_custom_call.1} parent=1 // pred_region
      _
    $region37: #{tpu_custom_call.1} parent=1 // pred_fallthru
      _
    %v34 = vld [vmem:[%s2] sm:$0xf]
    %v35 = vld [vmem:[%s2 + $0x4] sm:$0xf]
    %v36 = vld [vmem:[%s2 + $0x8] sm:$0xf]
    %v37 = vld [vmem:[%s2 + $0xc] sm:$0xf]
    %v38 = vld [vmem:[%s2 + $0x10] sm:$0xf]
    %v39 = vld [vmem:[%s2 + $0x14] sm:$0xf]
    %v40 = vld [vmem:[%s2 + $0x18] sm:$0xf]
    %v41 = vld [vmem:[%s2 + $0x1c] sm:$0xf]
    %v42 = vld [vmem:[%s0] sm:$0xf]
    %v43 = vld [vmem:[%s3] sm:$0xf]
    %v44 = vld [vmem:[%s3 + $0x4] sm:$0xf]
    %v45 = vld [vmem:[%s3 + $0x8] sm:$0xf]
    %v46 = vld [vmem:[%s3 + $0xc] sm:$0xf]
    %v47 = vld [vmem:[%s3 + $0x10] sm:$0xf]
    %v48 = vld [vmem:[%s3 + $0x14] sm:$0xf]
    %v49 = vld [vmem:[%s3 + $0x18] sm:$0xf]
    %v50 = vld [vmem:[%s3 + $0x1c] sm:$0xf]
    %v51 = vld [vmem:[%s1] sm:$0x3]
    %v60 = vunpack.c.l.b16 %v43
    %v61 = vunpack.c.l.b16 %v44
    %v62 = vunpack.c.l.b16 %v45
    %v63 = vunpack.c.l.b16 %v46
    %v64 = vunpack.c.l.b16 %v47
    %v65 = vunpack.c.l.b16 %v48
    %v66 = vunpack.c.l.b16 %v49
    %v67 = vunpack.c.l.b16 %v50
    %v68 = vpack.c.b16 %v61, %v60
    %v69 = vpack.c.b16 %v63, %v62
    %v70 = vpack.c.b16 %v65, %v64
    %v71 = vpack.c.b16 %v67, %v66
    %vm72 = vcmask 31744
    %v74 = vsel %vm72, %v68, 0
    %v77 = vsel %vm72, %v69, 0
    %v80 = vsel %vm72, %v70, 0
    %v83 = vsel %vm72, %v71, 0
    %vm85 = vcmask 1041408
    %v87 = vsel %vm85, %v51, 0
    %89 = vmatpush.bf16.msra.mxu0 0
    %90 = vmatpush.bf16.msra.mxu0 0
    %91 = vmatpush.bf16.msra.mxu0 0
    %92 = vmatpush.bf16.msra.mxu0 0
    %93 = vmatpush.bf16.msra.mxu0 0
    %94 = vmatpush.bf16.msra.mxu0 0
    %95 = vmatpush.bf16.msra.mxu0 0
    %96 = vmatpush.bf16.msra.mxu0 %v87
    %97 = vmatmul.bf16.gmra.mxu0 %v74
    %v98 = vpop.f32.mrf.mxu0
    %v99 = vadd.f32 0.0, %v98
    %v100 = vpop.f32.mrf.mxu0
    %v101 = vadd.f32 0.0, %v100
    %102 = vmatmul.bf16.gmra.mxu0 %v77
    %v103 = vpop.f32.mrf.mxu0
    %v104 = vadd.f32 0.0, %v103
    %v105 = vpop.f32.mrf.mxu0
    %v106 = vadd.f32 0.0, %v105
    %107 = vmatmul.bf16.gmra.mxu0 %v80
    %v108 = vpop.f32.mrf.mxu0
    %v109 = vadd.f32 0.0, %v108
    %v110 = vpop.f32.mrf.mxu0
    %v111 = vadd.f32 0.0, %v110
    %112 = vmatmul.bf16.gmra.mxu0 %v83
    %v113 = vpop.f32.mrf.mxu0
    %v114 = vadd.f32 0.0, %v113
    %v115 = vpop.f32.mrf.mxu0
    %v116 = vadd.f32 0.0, %v115
    %117 = vdwg.mxu0
    %v126 = vunpack.c.l.b16 %v34
    %v127 = vunpack.c.l.b16 %v35
    %v128 = vunpack.c.l.b16 %v36
    %v129 = vunpack.c.l.b16 %v37
    %v130 = vunpack.c.l.b16 %v38
    %v131 = vunpack.c.l.b16 %v39
    %v132 = vunpack.c.l.b16 %v40
    %v133 = vunpack.c.l.b16 %v41
    %v134 = vpack.c.b16 %v127, %v126
    %v135 = vpack.c.b16 %v129, %v128
    %v136 = vpack.c.b16 %v131, %v130
    %v137 = vpack.c.b16 %v133, %v132
    %vm138 = vcmask 64512
    %v140 = vsel %vm138, %v134, 0
    %v143 = vsel %vm138, %v135, 0
    %v146 = vsel %vm138, %v136, 0
    %v149 = vsel %vm138, %v137, 0
    %vm151 = vcmask 1043456
    %v153 = vsel %vm151, %v42, 0
    %155 = vmatpush.bf16.msra.mxu0 0
    %156 = vmatpush.bf16.msra.mxu0 0
    %157 = vmatpush.bf16.msra.mxu0 0
    %158 = vmatpush.bf16.msra.mxu0 0
    %159 = vmatpush.bf16.msra.mxu0 0
    %160 = vmatpush.bf16.msra.mxu0 0
    %161 = vmatpush.bf16.msra.mxu0 0
    %162 = vmatpush.bf16.msra.mxu0 %v153
    %163 = vmatmul.bf16.gmra.mxu0 %v140
    %v164 = vpop.f32.mrf.mxu0
    %v165 = vadd.f32 %v99, %v164
    %v166 = vpop.f32.mrf.mxu0
    %v167 = vadd.f32 %v101, %v166
    %168 = vmatmul.bf16.gmra.mxu0 %v143
    %v169 = vpop.f32.mrf.mxu0
    %v170 = vadd.f32 %v104, %v169
    %v171 = vpop.f32.mrf.mxu0
    %v172 = vadd.f32 %v106, %v171
    %173 = vmatmul.bf16.gmra.mxu0 %v146
    %v174 = vpop.f32.mrf.mxu0
    %v175 = vadd.f32 %v109, %v174
    %v176 = vpop.f32.mrf.mxu0
    %v177 = vadd.f32 %v111, %v176
    %178 = vmatmul.bf16.gmra.mxu0 %v149
    %v179 = vpop.f32.mrf.mxu0
    %v180 = vadd.f32 %v114, %v179
    %v181 = vpop.f32.mrf.mxu0
    %v182 = vadd.f32 %v116, %v181
    %183 = vdwg.mxu0
    %v184 = vld [vmem:[%s4] sm:$0xff]
    %v185 = vld [vmem:[%s4 + $0x8] sm:$0xff]
    %v186 = vld [vmem:[%s4 + $0x10] sm:$0xff]
    %v187 = vld [vmem:[%s4 + $0x18] sm:$0xff]
    %v188 = vld [vmem:[%s4 + $0x20] sm:$0xff]
    %v189 = vld [vmem:[%s4 + $0x28] sm:$0xff]
    %v190 = vld [vmem:[%s4 + $0x30] sm:$0xff]
    %v191 = vld [vmem:[%s4 + $0x38] sm:$0xff]
    %193 = vset.pattern.permute.xlu0 0
    %194 = vperm.xlu0 %193, %v184
    %v195 = vpop.permute.xlu0 %194
    %198 = vset.pattern.permute.xlu0 0
    %199 = vperm.xlu0 %198, %v185
    %v200 = vpop.permute.xlu0 %199
    %203 = vset.pattern.permute.xlu0 0
    %204 = vperm.xlu0 %203, %v186
    %v205 = vpop.permute.xlu0 %204
    %208 = vset.pattern.permute.xlu0 0
    %209 = vperm.xlu0 %208, %v187
    %v210 = vpop.permute.xlu0 %209
    %213 = vset.pattern.permute.xlu0 0
    %214 = vperm.xlu0 %213, %v188
    %v215 = vpop.permute.xlu0 %214
    %218 = vset.pattern.permute.xlu0 0
    %219 = vperm.xlu0 %218, %v189
    %v220 = vpop.permute.xlu0 %219
    %223 = vset.pattern.permute.xlu0 0
    %224 = vperm.xlu0 %223, %v190
    %v225 = vpop.permute.xlu0 %224
    %228 = vset.pattern.permute.xlu0 0
    %229 = vperm.xlu0 %228, %v191
    %v230 = vpop.permute.xlu0 %229
    %v232 = vadd.f32 %v165, %v195
    %v233 = vadd.f32 %v167, %v200
    %v234 = vadd.f32 %v170, %v205
    %v235 = vadd.f32 %v172, %v210
    %v236 = vadd.f32 %v175, %v215
    %v237 = vadd.f32 %v177, %v220
    %v238 = vadd.f32 %v180, %v225
    %v239 = vadd.f32 %v182, %v230
    %v240 = vmax.f32 %v232, 0.0
    %v241 = vmax.f32 %v233, 0.0
    %v242 = vmax.f32 %v234, 0.0
    %v243 = vmax.f32 %v235, 0.0
    %v244 = vmax.f32 %v236, 0.0
    %v245 = vmax.f32 %v237, 0.0
    %v246 = vmax.f32 %v238, 0.0
    %v247 = vmax.f32 %v239, 0.0
    %v248 = vpack.c.bf16 %v240, %v240
    %v249 = vpack.c.bf16 %v241, %v241
    %v250 = vpack.c.bf16 %v242, %v242
    %v251 = vpack.c.bf16 %v243, %v243
    %v252 = vpack.c.bf16 %v244, %v244
    %v253 = vpack.c.bf16 %v245, %v245
    %v254 = vpack.c.bf16 %v246, %v246
    %v255 = vpack.c.bf16 %v247, %v247
    %v256 = vld [vmem:[%s5] sm:$0xf]
    %v257 = vld [vmem:[%s5 + $0x4] sm:$0xf]
    %v258 = vld [vmem:[%s5 + $0x8] sm:$0xf]
    %v259 = vld [vmem:[%s5 + $0xc] sm:$0xf]
    %v260 = vld [vmem:[%s6] sm:$0xff]
    %v261 = vld [vmem:[%s6 + $0x8] sm:$0xff]
    %v262 = vld [vmem:[%s6 + $0x10] sm:$0xff]
    %v263 = vld [vmem:[%s6 + $0x18] sm:$0xff]
    %265 = vset.pattern.permute.xlu0 0
    %266 = vperm.xlu0 %265, %v260
    %v267 = vpop.permute.xlu0 %266
    %270 = vset.pattern.permute.xlu0 0
    %271 = vperm.xlu0 %270, %v261
    %v272 = vpop.permute.xlu0 %271
    %275 = vset.pattern.permute.xlu0 0
    %276 = vperm.xlu0 %275, %v262
    %v277 = vpop.permute.xlu0 %276
    %280 = vset.pattern.permute.xlu0 0
    %281 = vperm.xlu0 %280, %v263
    %v282 = vpop.permute.xlu0 %281
    %v288 = vunpack.c.l.b16 %v256
    %v289 = vunpack.c.l.b16 %v257
    %v290 = vunpack.c.l.b16 %v258
    %v291 = vunpack.c.l.b16 %v259
    %v292 = vpack.c.b16 %v289, %v288
    %v293 = vpack.c.b16 %v291, %v290
    %v298 = vunpack.c.l.b16 %v248
    %v299 = vunpack.c.l.b16 %v249
    %v300 = vunpack.c.l.b16 %v250
    %v301 = vunpack.c.l.b16 %v251
    %v302 = vpack.c.b16 %v299, %v298
    %v303 = vpack.c.b16 %v301, %v300
    %vm306 = vcmask 261120
    %v308 = vsel %vm306, %v292, 0
    %v311 = vsel %vm306, %v293, 0
    %313 = vmatpush.bf16.msra.mxu0 0
    %314 = vmatpush.bf16.msra.mxu0 0
    %315 = vmatpush.bf16.msra.mxu0 0
    %316 = vmatpush.bf16.msra.mxu0 0
    %317 = vmatpush.bf16.msra.mxu0 0
    %318 = vmatpush.bf16.msra.mxu0 0
    %319 = vmatpush.bf16.msra.mxu0 %v303
    %320 = vmatpush.bf16.msra.mxu0 %v302
    %321 = vmatmul.bf16.gmra.mxu0 %v308
    %v322 = vpop.f32.mrf.mxu0
    %v323 = vadd.f32 %v267, %v322
    %v324 = vpop.f32.mrf.mxu0
    %v325 = vadd.f32 %v272, %v324
    %326 = vmatmul.bf16.gmra.mxu0 %v311
    %v327 = vpop.f32.mrf.mxu0
    %v328 = vadd.f32 %v277, %v327
    %v329 = vpop.f32.mrf.mxu0
    %v330 = vadd.f32 %v282, %v329
    %331 = vdwg.mxu0
    %v332 = vmax.f32 %v323, 0.0
    %v333 = vmax.f32 %v325, 0.0
    %v334 = vmax.f32 %v328, 0.0
    %v335 = vmax.f32 %v330, 0.0
    %v336 = vpack.c.bf16 %v333, %v332
    %v337 = vpack.c.bf16 %v335, %v334
    %v338 = vld [vmem:[%s5 + $0x10] sm:$0xf]
    %v339 = vld [vmem:[%s5 + $0x14] sm:$0xf]
    %v340 = vld [vmem:[%s5 + $0x18] sm:$0xf]
    %v341 = vld [vmem:[%s5 + $0x1c] sm:$0xf]
    %v342 = vld [vmem:[%s6 + $0x20] sm:$0xff]
    %v343 = vld [vmem:[%s6 + $0x28] sm:$0xff]
    %v344 = vld [vmem:[%s6 + $0x30] sm:$0xff]
    %v345 = vld [vmem:[%s6 + $0x38] sm:$0xff]
    %347 = vset.pattern.permute.xlu0 0
    %348 = vperm.xlu0 %347, %v342
    %v349 = vpop.permute.xlu0 %348
    %352 = vset.pattern.permute.xlu0 0
    %353 = vperm.xlu0 %352, %v343
    %v354 = vpop.permute.xlu0 %353
    %357 = vset.pattern.permute.xlu0 0
    %358 = vperm.xlu0 %357, %v344
    %v359 = vpop.permute.xlu0 %358
    %362 = vset.pattern.permute.xlu0 0
    %363 = vperm.xlu0 %362, %v345
    %v364 = vpop.permute.xlu0 %363
    %v370 = vunpack.c.l.b16 %v338
    %v371 = vunpack.c.l.b16 %v339
    %v372 = vunpack.c.l.b16 %v340
    %v373 = vunpack.c.l.b16 %v341
    %v374 = vpack.c.b16 %v371, %v370
    %v375 = vpack.c.b16 %v373, %v372
    %v380 = vunpack.c.l.b16 %v252
    %v381 = vunpack.c.l.b16 %v253
    %v382 = vunpack.c.l.b16 %v254
    %v383 = vunpack.c.l.b16 %v255
    %v384 = vpack.c.b16 %v381, %v380
    %v385 = vpack.c.b16 %v383, %v382
    %v389 = vsel %vm306, %v374, 0
    %v392 = vsel %vm306, %v375, 0
    %394 = vmatpush.bf16.msra.mxu0 0
    %395 = vmatpush.bf16.msra.mxu0 0
    %396 = vmatpush.bf16.msra.mxu0 0
    %397 = vmatpush.bf16.msra.mxu0 0
    %398 = vmatpush.bf16.msra.mxu0 0
    %399 = vmatpush.bf16.msra.mxu0 0
    %400 = vmatpush.bf16.msra.mxu0 %v385
    %401 = vmatpush.bf16.msra.mxu0 %v384
    %402 = vmatmul.bf16.gmra.mxu0 %v389
    %v403 = vpop.f32.mrf.mxu0
    %v404 = vadd.f32 %v349, %v403
    %v405 = vpop.f32.mrf.mxu0
    %v406 = vadd.f32 %v354, %v405
    %407 = vmatmul.bf16.gmra.mxu0 %v392
    %v408 = vpop.f32.mrf.mxu0
    %v409 = vadd.f32 %v359, %v408
    %v410 = vpop.f32.mrf.mxu0
    %v411 = vadd.f32 %v364, %v410
    %412 = vdwg.mxu0
    %v413 = vmax.f32 %v404, 0.0
    %v414 = vmax.f32 %v406, 0.0
    %v415 = vmax.f32 %v409, 0.0
    %v416 = vmax.f32 %v411, 0.0
    %v417 = vpack.c.bf16 %v414, %v413
    %v418 = vpack.c.bf16 %v416, %v415
    %v419 = vld [vmem:[%s7] sm:$0x1]
    %v420 = vld [vmem:[%s8] sm:$0x1]
    %422 = vset.pattern.permute.xlu0 0
    %423 = vperm.xlu0 %422, %v420
    %v424 = vpop.permute.xlu0 %423
    %v427 = vsel %vm306, %v419, 0
    %429 = vmatpush.bf16.msra.mxu0 0
    %430 = vmatpush.bf16.msra.mxu0 0
    %431 = vmatpush.bf16.msra.mxu0 0
    %432 = vmatpush.bf16.msra.mxu0 0
    %433 = vmatpush.bf16.msra.mxu0 0
    %434 = vmatpush.bf16.msra.mxu0 0
    %435 = vmatpush.bf16.msra.mxu0 %v337
    %436 = vmatpush.bf16.msra.mxu0 %v336
    %437 = vmatmul.bf16.gmra.mxu0 %v427
    %v438 = vpop.f32.mrf.mxu0
    %v439 = vadd.f32 %v424, %v438
    %v440 = vpop.f32.mrf.mxu0
    %441 = vdwg.mxu0
    %v442 = vld [vmem:[%s8 + $0x1] sm:$0x1]
    %444 = vset.pattern.permute.xlu0 0
    %445 = vperm.xlu0 %444, %v442
    %v446 = vpop.permute.xlu0 %445
    %448 = vst [vmem:[#allocation1] ss:$9 sm:$0xff] %v419
    %v449 = vld [vmem:[#allocation1] sm:$0xff]
    %v450 = vshrl.u32 %v449, 16
    %v453 = vsel %vm306, %v450, 0
    %455 = vmatpush.bf16.msra.mxu0 0
    %456 = vmatpush.bf16.msra.mxu0 0
    %457 = vmatpush.bf16.msra.mxu0 0
    %458 = vmatpush.bf16.msra.mxu0 0
    %459 = vmatpush.bf16.msra.mxu0 0
    %460 = vmatpush.bf16.msra.mxu0 0
    %461 = vmatpush.bf16.msra.mxu0 %v418
    %462 = vmatpush.bf16.msra.mxu0 %v417
    %463 = vmatmul.bf16.gmra.mxu0 %v453
    %v464 = vpop.f32.mrf.mxu0
    %v465 = vadd.f32 %v446, %v464
    %v466 = vpop.f32.mrf.mxu0
    %467 = vdwg.mxu0
    %v468 = vmin.f32 %v439, %v465
    %469 = vst [vmem:[#allocation2] sm:$0x1] %v468
    // Predicated region
    $region38: #{tpu_custom_call.1} parent=1 // pred_check
      _
    $region39: #{tpu_custom_call.1} parent=1 // pred_check_branch
      %471 = sbr.rel (0) target = $region41
    $region40: #{tpu_custom_call.1} parent=1 // pred_region
      %473 = vsyncadd [#allocation3], 0
      %s475 = sshll.u32 [#allocation2], 4
      %s476 = int_to_ptr.vmem [resolvable:$true] %s475
      %s477 = sshll.u32 %s9, 4
      %s478 = int_to_ptr.hbm [resolvable:$true] %s477
      %480 = dma.vmem_to_hbm [thread:$0]  %s476, 16, %s478, [#allocation3]
    $region41: #{tpu_custom_call.1} parent=1 // pred_fallthru
      _
    // Predicated region
    $region42: #{tpu_custom_call.1} parent=1 // pred_check
      _
    $region43: #{tpu_custom_call.1} parent=1 // pred_check_branch
      %482 = sbr.rel (0) target = $region45
    $region44: #{tpu_custom_call.1} parent=1 // pred_region
      %484 = dma.done [#allocation3], 16
    $region45: #{tpu_custom_call.1} parent=1 // pred_fallthru
      _
    %485 = vsyncpa [#allocation3], 1

</llo_original>
